<compile_context>
chip_gen: v7x
topology: tpu7x:2x2x1
jax: 0.10.0
libtpu: 0.0.40
codegen_flags: <defaults>
</compile_context>

<pallas_src>
import functools

import jax
import jax.numpy as jnp
from jax.experimental import pallas as pl
from jax.experimental.pallas import tpu as pltpu


def mlp_kernel(xT_ref, p_ref, b2_ref, o_ref, *, n_valid, h_dim):
    # xT:  (1, N_pad)   batch on lanes (lane-dense)
    # p:   (H, 3)       packed [W1^T | b1^T | W2] columns (H on sublanes)
    # b2:  (1, 1)       output bias, in SMEM (scalar)
    xT = xT_ref[...]                                   # (1, N_pad)

    w1c = p_ref[:, 0:1]                                # (H, 1) static slice, free
    b1c = p_ref[:, 1:2]                                # (H, 1)
    w2c = p_ref[:, 2:3]                                # (H, 1)

    # Layer 1: K=1 contraction == outer product -> pure VPU broadcast mul + add.
    h = jnp.maximum(w1c * xT + b1c, 0.0)               # (H, N_pad), ReLU on VPU

    # Layer 2: N_out=1 contraction -> VPU mul, VPU partial sums over 8-row
    # groups, then a single 8-sublane XLU reduce (keeps XLU to one op).
    prod = h * w2c                                     # (H, N_pad)
    if h_dim > 8 and h_dim % 8 == 0:
        prod = prod.reshape(h_dim // 8, 8, prod.shape[-1])
        prod = jnp.sum(prod, axis=0)                   # VALU adds -> (8, N_pad)
    out = jnp.sum(prod, axis=0, keepdims=True)         # XLU sublane reduce -> (1, N_pad)
    out = out + b2_ref[0, 0]                           # scalar bias from SMEM

    # Zero the padded lanes so nothing downstream can ever see garbage.
    lane = jax.lax.broadcasted_iota(jnp.int32, out.shape, 1)
    out = jnp.where(lane < n_valid, out, 0.0)
    o_ref[...] = out.astype(o_ref.dtype)               # lane-dense unmasked store


@jax.jit
def net_forward(x, packed_params, b2_2d):
    """relu(x @ W1 + b1) @ W2 + b2 with W1^T/b1^T/W2 packed as (H, 3)."""
    n, f = x.shape
    h_dim = packed_params.shape[0]
    assert f == 1, "kernel is specialized for F=1, O=1 (as in the spec)"

    n_pad = ((n + 127) // 128) * 128
    # Single pad op; fused into the pallas_call via allow_input_fusion.
    xT = jnp.pad(x[:, 0][None, :], ((0, 0), (0, n_pad - n)))   # (1, N_pad)

    bytes_in = (xT.size + packed_params.size + b2_2d.size) * 4
    bytes_out = n_pad * 4

    out_t = pl.pallas_call(
        functools.partial(mlp_kernel, n_valid=n, h_dim=h_dim),
        out_shape=jax.ShapeDtypeStruct((1, n_pad), x.dtype),
        in_specs=[
            pl.BlockSpec(memory_space=pltpu.VMEM),   # xT     (1, N_pad)
            pl.BlockSpec(memory_space=pltpu.VMEM),   # packed (H, 3)
            pl.BlockSpec(memory_space=pltpu.SMEM),   # b2     (1, 1) scalar
        ],
        out_specs=pl.BlockSpec(memory_space=pltpu.VMEM),
        compiler_params=pltpu.CompilerParams(
            # Let the tiny pad producer of xT fuse into this call (no extra launch).
            allow_input_fusion=[True, False, False],
        ),
        cost_estimate=pl.CostEstimate(
            flops=2 * n * (h_dim + h_dim),
            transcendentals=0,
            bytes_accessed=bytes_in + bytes_out,
        ),
    )(xT, packed_params, b2_2d)

    # Strip lane padding, restore the (N, 1) layout of the PyTorch module.
    return out_t[0, :n][:, None]


def pack_params(w1, b1, w2, b2):
    """One-time (outside the per-call path) packing of the layer parameters.

    w1: (1, H), b1: (1, H), w2: (H, 1), b2: (1, 1)  ->  packed (H, 3), b2 (1, 1)
    """
    packed = jnp.concatenate([w1.T, b1.T, w2], axis=1)          # (H, 3)
    return packed, b2.reshape(1, 1)


def init_linear_params(key, fan_in, fan_out, dtype=jnp.float32):
    """Deterministic init mimicking torch.nn.Linear default (uniform ±1/sqrt(fan_in))."""
    k_w, k_b = jax.random.split(key)
    bound = 1.0 / (fan_in ** 0.5)
    w = jax.random.uniform(k_w, (fan_in, fan_out), dtype, minval=-bound, maxval=bound)
    b = jax.random.uniform(k_b, (1, fan_out), dtype, minval=-bound, maxval=bound)
    return w, b


if __name__ == "__main__":
    # Matches the reference script: x = unsqueeze(linspace(-1, 1, 100), dim=1) -> (100, 1)
    n_features, n_hidden, n_output = 1, 32, 1
    n_samples = 100

    key = jax.random.PRNGKey(0)
    k1, k2 = jax.random.split(key)

    x = jnp.linspace(-1.0, 1.0, n_samples, dtype=jnp.float32)[:, None]  # (100, 1)
    w1, b1 = init_linear_params(k1, n_features, n_hidden)               # (1, 32), (1, 32)
    w2, b2 = init_linear_params(k2, n_hidden, n_output)                 # (32, 1), (1, 1)

    # Parameter reshapes/packing hoisted out of the per-call path (constants across calls).
    packed, b2_2d = pack_params(w1, b1, w2, b2)

    out = net_forward(x, packed, b2_2d)
    out = jax.block_until_ready(out)

    # Pure-JAX reference check of the forward-pass semantics.
    ref = jnp.maximum(x @ w1 + b1, 0.0) @ w2 + b2
    assert out.shape == (n_samples, n_output)
    assert jnp.allclose(out, ref, atol=1e-5, rtol=1e-5)

    print("KERNEL_OK")
</pallas_src>

<mosaic_0001>
module attributes {stable_mosaic.version = 11 : i64} {
  func.func @mlp_kernel(%arg0: memref<1x128xf32, #tpu.memory_space<vmem>>, %arg1: memref<32x3xf32, #tpu.memory_space<vmem>>, %arg2: memref<1x1xf32, #tpu.memory_space<smem>>, %arg3: memref<1x128xf32, #tpu.memory_space<vmem>>) attributes {dimension_semantics = [], scalar_prefetch = 0 : i64, scratch_operands = 0 : i64, tpu.core_type = #tpu.core_type<tc>} {
    %c0 = arith.constant 0 : index
    %c0_0 = arith.constant 0 : index
    %0 = vector.load %arg0[%c0, %c0_0] : memref<1x128xf32, #tpu.memory_space<vmem>>, vector<1x128xf32>
    %c0_1 = arith.constant 0 : index
    %c0_2 = arith.constant 0 : index
    %1 = vector.load %arg1[%c0_1, %c0_2] : memref<32x3xf32, #tpu.memory_space<vmem>>, vector<32x1xf32>
    %c0_3 = arith.constant 0 : index
    %c1 = arith.constant 1 : index
    %2 = vector.load %arg1[%c0_3, %c1] : memref<32x3xf32, #tpu.memory_space<vmem>>, vector<32x1xf32>
    %c0_4 = arith.constant 0 : index
    %c2 = arith.constant 2 : index
    %3 = vector.load %arg1[%c0_4, %c2] : memref<32x3xf32, #tpu.memory_space<vmem>>, vector<32x1xf32>
    %4 = vector.broadcast %1 : vector<32x1xf32> to vector<32x128xf32>
    %5 = vector.broadcast %0 : vector<1x128xf32> to vector<32x128xf32>
    %6 = arith.mulf %4, %5 : vector<32x128xf32>
    %7 = vector.broadcast %2 : vector<32x1xf32> to vector<32x128xf32>
    %8 = arith.addf %6, %7 : vector<32x128xf32>
    %cst = arith.constant 0.000000e+00 : f32
    %9 = vector.broadcast %cst : f32 to vector<32x128xf32>
    %10 = arith.maximumf %8, %9 : vector<32x128xf32>
    %11 = vector.broadcast %3 : vector<32x1xf32> to vector<32x128xf32>
    %12 = arith.mulf %10, %11 : vector<32x128xf32>
    %13 = vector.shape_cast %12 : vector<32x128xf32> to vector<4x8x128xf32>
    %cst_5 = arith.constant dense<0.000000e+00> : vector<8x128xf32>
    %14 = vector.multi_reduction <add>, %13, %cst_5 [0] : vector<4x8x128xf32> to vector<8x128xf32>
    %cst_6 = arith.constant dense<0.000000e+00> : vector<128xf32>
    %15 = vector.multi_reduction <add>, %14, %cst_6 [0] : vector<8x128xf32> to vector<128xf32>
    %16 = vector.shape_cast %15 : vector<128xf32> to vector<1x128xf32>
    %c0_7 = arith.constant 0 : index
    %c0_8 = arith.constant 0 : index
    %17 = memref.load %arg2[%c0_7, %c0_8] : memref<1x1xf32, #tpu.memory_space<smem>>
    %18 = vector.broadcast %17 : f32 to vector<1x128xf32>
    %19 = arith.addf %16, %18 : vector<1x128xf32>
    %20 = tpu.iota {dimensions = array<i32: 1>} : vector<1x128xi32>
    %c100_i32 = arith.constant 100 : i32
    %21 = vector.broadcast %c100_i32 : i32 to vector<1x128xi32>
    %22 = arith.cmpi slt, %20, %21 : vector<1x128xi32>
    %cst_9 = arith.constant 0.000000e+00 : f32
    %23 = vector.broadcast %cst_9 : f32 to vector<1x128xf32>
    %24 = arith.select %22, %19, %23 : vector<1x128xi1>, vector<1x128xf32>
    %c0_10 = arith.constant 0 : index
    %c0_11 = arith.constant 0 : index
    %25 = vector.load %arg3[%c0_10, %c0_11] : memref<1x128xf32, #tpu.memory_space<vmem>>, vector<1x128xf32>
    tpu.vector_store %arg3[%c0_10, %c0_11], %24 {strides = array<i32>} : memref<1x128xf32, #tpu.memory_space<vmem>>, vector<1x128xf32>,
    return
  }
}

</mosaic_0001>

<llo_original>
// kernel: net_forward.2
$region0: #{net_forward.2}
  #allocation0 [shape = 'u32[]', space=smem, size = 0x4, offset = 0x4, fixed_abs, tag = 'smem constant byte address 0x4 - core index']
  #allocation1 [shape = 'u32[144,128]{1,0:T(1,128)}', space=vmem, size = 0x12000, scoped, tag = 'internal scratch']
  #allocation2 [shape = 'u32[2048]{0}', space=vmem, size = 0x2000, scoped, tag = 'scoped memory for net_forward.2']
  #allocation3 [shape = 'u32[2048]{0}', space=vmem, size = 0x2000, scoped, tag = 'scoped memory for net_forward.2']
  #allocation4 [shape = 'u32[2048]{0}', space=vmem, size = 0x2000, scoped, tag = 'scoped memory for net_forward.2']
  #allocation5 [shape = 'u32[2048]{0}', space=vmem, size = 0x2000, scoped, tag = 'scoped memory for net_forward.2']
  #allocation6 [shape = 'u32[2048]{0}', space=vmem, size = 0x2000, scoped, tag = 'scoped memory for net_forward.2']
  #allocation7 [shape = 'f32[1,1]{1,0:T(1,128)S(6)}', space=smem, size = 0x200, scoped, tag = 'scoped memory for net_forward.2']
  %s0 = inlined_call_operand.vmem [shape: f32[32,3], index: 0, kind: input, shape index: {}]
  %s1 = inlined_call_operand.<no memory space> [shape: f32[1,1], index: 1, kind: input, shape index: {}]
  %s2 = inlined_call_operand.vmem [shape: f32[1,100], index: 2, kind: input, shape index: {}]
  %s3 = inlined_call_operand.<no memory space> [shape: f32[], index: 3, kind: input, shape index: {}]
  %s4 = inlined_call_operand.vmem [shape: f32[1,128], index: 4, kind: output, shape index: {}]
  %s5 = sld [smem:[#allocation0]]
  $region22: #{net_forward.2} parent=0
    _
  %s7 = ssub.s32 1, %s5
  %s8 = scalar_select 0, %s7, %s5
  %v9 = vstv %s3
  %10 = sst [smem:[#allocation7]] %s1
  $region1: #{net_forward.2} parent=0
    #allocation8 [shape = 'u8[512]{0}', space=vmem, size = 0x400, dematerialized = true, scoped, tag = 'FusionAdapter Buffer %fusion.1 = f32[1,128]{1,0:T(1,128)} fusion(%param_2.1, %param_3), kind=kLoop, calls=%fused_computation.1.clone, metadata={op_name="jit(net_forward)/jit(_pad)/pad" stack_frame_id=1}']
    // Predicated region
    $region2: #{net_forward.2} parent=1 // pred_check
      _
    $region3: #{net_forward.2} parent=1 // pred_check_branch
      %12 = sbr.rel (0) target = $region5
    $region4: #{net_forward.2} parent=1 // pred_region
      _
    $region5: #{net_forward.2} parent=1 // pred_fallthru
      _
    // Predicated region
    $region6: #{net_forward.2} parent=1 // pred_check
      _
    $region7: #{net_forward.2} parent=1 // pred_check_branch
      %14 = sbr.rel (0) target = $region9
    $region8: #{net_forward.2} parent=1 // pred_region
      _
    $region9: #{net_forward.2} parent=1 // pred_fallthru
      _
    // Predicated region
    $region10: #{net_forward.2} parent=1 // pred_check
      _
    $region11: #{net_forward.2} parent=1 // pred_check_branch
      %16 = sbr.rel (0) target = $region13
    $region12: #{net_forward.2} parent=1 // pred_region
      _
    $region13: #{net_forward.2} parent=1 // pred_fallthru
      _
    %v17 = vld [vmem:[%s2] sm:$0x1]
    %v18 = vlaneseq
    %v19 = vshrl.u32 %v18, 7
    %vm21 = vcmp.lt.s32.totalorder %v19, 1
    %v22 = vsel %vm21, %v17, %v9
    %v23 = vlaneseq
    %v24 = vand.u32 %v23, 127
    %vm26 = vcmp.lt.s32.totalorder %v24, 100
    %v27 = vsel %vm26, %v22, %v9
    %29 = vst [vmem:[#allocation8] sm:$0x1] %v27
    %v30 = vld [vmem:[#allocation8] sm:$0x1]
    %v31 = vld [vmem:[%s0] sm:$0xff]
    %v32 = vld [vmem:[%s0 + $0x8] sm:$0xff]
    %v33 = vld [vmem:[%s0 + $0x10] sm:$0xff]
    %v34 = vld [vmem:[%s0 + $0x18] sm:$0xff]
    %36 = vset.pattern.permute.xlu0 0
    %37 = vperm.xlu0 %36, %v31
    %v38 = vpop.permute.xlu0 %37
    %41 = vset.pattern.permute.xlu0 0
    %42 = vperm.xlu0 %41, %v32
    %v43 = vpop.permute.xlu0 %42
    %46 = vset.pattern.permute.xlu0 0
    %47 = vperm.xlu0 %46, %v33
    %v48 = vpop.permute.xlu0 %47
    %51 = vset.pattern.permute.xlu0 0
    %52 = vperm.xlu0 %51, %v34
    %v53 = vpop.permute.xlu0 %52
    %v56 = vlaneseq
    %v57 = vshrl.u32 %v56, 7
    %v58 = vsub.s32 0, %v57
    %v59 = vrot.slane %v30, %v58
    %v61 = vmul.f32 %v38, %v59
    %v62 = vmul.f32 %v43, %v59
    %v63 = vmul.f32 %v48, %v59
    %v64 = vmul.f32 %v53, %v59
    %65 = vset.pattern.permute.xlu0 1
    %66 = vperm.xlu0 %65, %v31
    %v67 = vpop.permute.xlu0 %66
    %69 = vset.pattern.permute.xlu0 1
    %70 = vperm.xlu0 %69, %v32
    %v71 = vpop.permute.xlu0 %70
    %73 = vset.pattern.permute.xlu0 1
    %74 = vperm.xlu0 %73, %v33
    %v75 = vpop.permute.xlu0 %74
    %77 = vset.pattern.permute.xlu0 1
    %78 = vperm.xlu0 %77, %v34
    %v79 = vpop.permute.xlu0 %78
    %v81 = vadd.f32 %v61, %v67
    %v82 = vadd.f32 %v62, %v71
    %v83 = vadd.f32 %v63, %v75
    %v84 = vadd.f32 %v64, %v79
    %v85 = vmax.f32 %v81, 0.0
    %v86 = vmax.f32 %v82, 0.0
    %v87 = vmax.f32 %v83, 0.0
    %v88 = vmax.f32 %v84, 0.0
    %89 = vset.pattern.permute.xlu0 2
    %90 = vperm.xlu0 %89, %v31
    %v91 = vpop.permute.xlu0 %90
    %93 = vset.pattern.permute.xlu0 2
    %94 = vperm.xlu0 %93, %v32
    %v95 = vpop.permute.xlu0 %94
    %97 = vset.pattern.permute.xlu0 2
    %98 = vperm.xlu0 %97, %v33
    %v99 = vpop.permute.xlu0 %98
    %101 = vset.pattern.permute.xlu0 2
    %102 = vperm.xlu0 %101, %v34
    %v103 = vpop.permute.xlu0 %102
    %v105 = vmul.f32 %v85, %v91
    %v106 = vmul.f32 %v86, %v95
    %v107 = vmul.f32 %v87, %v99
    %v108 = vmul.f32 %v88, %v103
    %v109 = vadd.f32 %v105, %v106
    %v110 = vadd.f32 %v109, %v107
    %v111 = vadd.f32 %v110, %v108
    %v112 = vrot.slane %v111, 4
    %v113 = vadd.f32 %v111, %v112
    %v114 = vrot.slane %v113, 2
    %v115 = vadd.f32 %v113, %v114
    %v116 = vrot.slane %v115, 1
    %v117 = vadd.f32 %v115, %v116
    %s118 = sld [smem:[#allocation7]]
    %v119 = vstv %s118
    %v120 = vadd.f32 %v117, %v119
    %v121 = vlaneseq
    %v122 = vand.u32 %v121, 127
    %vm123 = vcmp.lt.s32.totalorder %v122, 100
    %v124 = vsel %vm123, %v120, 0.0
    %125 = vst [vmem:[%s4] sm:$0x1] %v124
    // Predicated region
    $region14: #{net_forward.2} parent=1 // pred_check
      _
    $region15: #{net_forward.2} parent=1 // pred_check_branch
      %127 = sbr.rel (0) target = $region17
    $region16: #{net_forward.2} parent=1 // pred_region
      _
    $region17: #{net_forward.2} parent=1 // pred_fallthru
      _
    // Predicated region
    $region18: #{net_forward.2} parent=1 // pred_check
      _
    $region19: #{net_forward.2} parent=1 // pred_check_branch
      %129 = sbr.rel (0) target = $region21
    $region20: #{net_forward.2} parent=1 // pred_region
      _
    $region21: #{net_forward.2} parent=1 // pred_fallthru
      _

</llo_original>
